<compile_context>
chip_gen: v7x
topology: tpu7x:2x2x1
jax: 0.10.0
libtpu: 0.0.40
codegen_flags: <defaults>
</compile_context>

<pallas_src>
import jax
import jax.numpy as jnp
from jax.experimental import pallas as pl
from jax.experimental.pallas import tpu as pltpu


def gcn_group_kernel(adj_ref, x_ref, r_ref, w1_ref, b1_ref, w2_ref, b2_ref, out_ref):
    """One grid step = one group of G graphs stacked into GN = G*N node rows.

    adj_ref : (GN, GN)  block-diagonal normalized adjacency of the group (bf16/f32)
    x_ref   : (GN, Fin) stacked node features (bf16/f32)
    r_ref   : (G, GN)   fused per-graph readout rows (1/N)*1ᵀÂ_g, block-placed
    w1_ref  : (Fin, H), w2_ref: (H, Cp)      (VMEM-resident across steps)
    b1_ref  : (1, H),   b2_ref: (1, Cp)      (f32)
    out_ref : (G, Cp)   per-graph logits, lane-padded to Cp (multiple of 128), f32
    """
    adj = adj_ref[...]
    x = x_ref[...]
    r = r_ref[...]
    w1 = w1_ref[...]
    w2 = w2_ref[...]
    cdt = adj.dtype  # compute (operand) dtype: bf16 or f32

    # ---- GraphConv 1: relu( Â X W1 + b1 ) ----
    # (X @ W1) first, so the big GNxGN matmul has output width H, not Fin.
    xw = jnp.dot(x, w1, preferred_element_type=jnp.float32)               # (GN, H)
    h1 = jnp.dot(adj, xw.astype(cdt), preferred_element_type=jnp.float32)  # (GN, H)
    h1 = jnp.maximum(h1 + b1_ref[...], 0.0)                                # f32 VPU

    # ---- GraphConv 2 fused with mean_nodes readout ----
    # mean_n( Â h1 W2 + b2 ) == ((1/N)·1ᵀÂ) @ h1 @ W2 + b2 == R @ h1 @ W2 + b2
    rh = jnp.dot(r, h1.astype(cdt), preferred_element_type=jnp.float32)    # (G, H)
    out = jnp.dot(rh.astype(cdt), w2, preferred_element_type=jnp.float32)  # (G, Cp)
    out_ref[...] = out + b2_ref[...]


def gcn_forward(adj_norm, x, w1, b1, w2, b2, *, group=16, lane_pad=128,
                use_bf16=True):
    """adj_norm: (B, N, N) normalized Â, x: (B, N, Fin) -> (B, num_classes).

    group: graphs per grid step. GN = group*N should sit near the MXU-native tile
    (128 on v5e, 256 on v6e/v7x); keep ngroups >= 2 on v7x so both TensorCores work,
    i.e. group ~= min(32, Bp // 2).
    """
    B, N, _ = adj_norm.shape
    Fin = x.shape[-1]
    H = w1.shape[1]
    C = w2.shape[1]
    cdt = jnp.bfloat16 if use_bf16 else jnp.float32

    # ---- graph-batch preprocessing (plain JAX glue, not the hot path) ----
    # TODO(synk): variable node counts per graph (true DGL batching) would need a
    # per-graph valid-node divisor; here every graph has exactly N nodes.
    Bp = ((B + group - 1) // group) * group
    if Bp != B:
        pad = Bp - B
        adj_norm = jnp.concatenate(
            [adj_norm, jnp.zeros((pad, N, N), adj_norm.dtype)], axis=0)
        x = jnp.concatenate([x, jnp.zeros((pad, N, Fin), x.dtype)], axis=0)
    ngroups = Bp // group
    GN = group * N

    # Fused readout rows r_g = (1/N)·1ᵀÂ_g (computed in f32, then cast), block-placed.
    r = adj_norm.sum(axis=1) / N                      # (Bp, N) column sums / N
    r = r.reshape(ngroups, group, N)
    eye_g = jnp.eye(group, dtype=r.dtype)
    r_bd = (eye_g[None, :, :, None] * r[:, :, None, :]).reshape(ngroups, group, GN)

    # Block-diagonal grouped Â via dynamic_update_slice (no (G,G,N,N) broadcast
    # + transpose intermediates), in the compute dtype to halve HBM traffic.
    a = adj_norm.astype(cdt).reshape(ngroups, group, N, N)

    def _block_diag(blocks):                          # (group, N, N) -> (GN, GN)
        out0 = jnp.zeros((GN, GN), blocks.dtype)

        def body(i, acc):
            return jax.lax.dynamic_update_slice(acc, blocks[i], (i * N, i * N))

        return jax.lax.fori_loop(0, group, body, out0)

    adj_bd = jax.vmap(_block_diag)(a)                 # (ngroups, GN, GN)

    x_st = x.astype(cdt).reshape(ngroups, GN, Fin)
    r_bd = r_bd.astype(cdt)
    w1c = w1.astype(cdt)

    # Lane-dense output: pad num_classes up to a multiple of 128 with zero columns.
    Cp = ((C + lane_pad - 1) // lane_pad) * lane_pad
    if Cp != C:
        w2p = jnp.concatenate([w2, jnp.zeros((H, Cp - C), w2.dtype)], axis=1)
        b2p = jnp.concatenate([b2, jnp.zeros((1, Cp - C), b2.dtype)], axis=1)
    else:
        w2p, b2p = w2, b2
    w2c = w2p.astype(cdt)
    b1f = b1.astype(jnp.float32)
    b2f = b2p.astype(jnp.float32)

    out = pl.pallas_call(
        gcn_group_kernel,
        out_shape=jax.ShapeDtypeStruct((ngroups, group, Cp), jnp.float32),
        grid_spec=pltpu.PrefetchScalarGridSpec(
            num_scalar_prefetch=0,
            grid=(ngroups,),
            in_specs=[
                pl.BlockSpec((None, GN, GN), lambda g: (g, 0, 0)),     # Â (block-diag)
                pl.BlockSpec((None, GN, Fin), lambda g: (g, 0, 0)),    # X stacked
                pl.BlockSpec((None, group, GN), lambda g: (g, 0, 0)),  # readout R
                pl.BlockSpec((Fin, H), lambda g: (0, 0)),              # W1 (resident)
                pl.BlockSpec((1, H), lambda g: (0, 0)),                # b1 (f32)
                pl.BlockSpec((H, Cp), lambda g: (0, 0)),               # W2 (padded)
                pl.BlockSpec((1, Cp), lambda g: (0, 0)),               # b2 (padded, f32)
            ],
            out_specs=pl.BlockSpec((None, group, Cp), lambda g: (g, 0, 0)),
        ),
        compiler_params=pltpu.CompilerParams(
            dimension_semantics=("parallel",),        # shardable across TCs on v7x
            vmem_limit_bytes=32 * 1024 * 1024,        # explicit; tiny usage at GN=256
        ),
    )(adj_bd, x_st, r_bd, w1c, b1f, w2c, b2f)

    return out.reshape(Bp, Cp)[:B, :C]


def normalized_adjacency(adj):
    """Glue (plain JAX): Â = D^{-1/2} (A + I) D^{-1/2}, batched over graphs."""
    B, N, _ = adj.shape
    a = adj + jnp.eye(N, dtype=adj.dtype)[None]          # add self loops
    deg = jnp.sum(a, axis=-1)                            # (B, N)
    d_inv_sqrt = 1.0 / jnp.sqrt(jnp.maximum(deg, 1e-12))
    return a * d_inv_sqrt[:, :, None] * d_inv_sqrt[:, None, :]


if __name__ == "__main__":
    # Batch of 32 small graphs, 16 nodes each: grouped 16-per-step -> GN = 256
    # stacked node rows per MXU pass, grid of 2 parallel steps (keeps both v7x TCs busy).
    B, N = 32, 16
    in_feats, h_feats, num_classes = 8, 32, 4

    key = jax.random.PRNGKey(0)
    k_adj, k_x, k_w1, k_b1, k_w2, k_b2 = jax.random.split(key, 6)

    # Random undirected graphs (dense adjacency), deterministic.
    raw = jax.random.bernoulli(k_adj, p=0.3, shape=(B, N, N)).astype(jnp.float32)
    adj = jnp.maximum(raw, jnp.swapaxes(raw, -1, -2))     # symmetrize
    adj = adj * (1.0 - jnp.eye(N, dtype=jnp.float32))     # no explicit self loops yet
    adj_norm = normalized_adjacency(adj)                  # (B, N, N)

    x = jax.random.normal(k_x, (B, N, in_feats), dtype=jnp.float32)

    # Deterministic parameter init (GraphConv: weight (Fin, Fout) + bias (Fout,)).
    w1 = jax.random.normal(k_w1, (in_feats, h_feats), dtype=jnp.float32) * 0.1
    b1 = jax.random.normal(k_b1, (1, h_feats), dtype=jnp.float32) * 0.01
    w2 = jax.random.normal(k_w2, (h_feats, num_classes), dtype=jnp.float32) * 0.1
    b2 = jax.random.normal(k_b2, (1, num_classes), dtype=jnp.float32) * 0.01

    # Pure-JAX reference of the exact module semantics (f32).
    h1_ref = jnp.maximum(jnp.einsum("bnm,bmf->bnf", adj_norm, x) @ w1 + b1, 0.0)
    h2_ref = jnp.einsum("bnm,bmf->bnf", adj_norm, h1_ref) @ w2 + b2
    ref = jnp.mean(h2_ref, axis=1)

    # Fast path: bf16 operands, f32 accumulation.
    out_bf16 = gcn_forward(adj_norm, x, w1, b1, w2, b2, group=16, use_bf16=True)
    out_bf16 = jax.block_until_ready(out_bf16)
    assert out_bf16.shape == (B, num_classes)
    assert jnp.allclose(out_bf16, ref, atol=2e-2, rtol=2e-2)

    # Strict-precision path: same kernel in f32 end-to-end.
    out_f32 = gcn_forward(adj_norm, x, w1, b1, w2, b2, group=16, use_bf16=False)
    out_f32 = jax.block_until_ready(out_f32)
    assert out_f32.shape == (B, num_classes)
    assert jnp.allclose(out_f32, ref, atol=1e-4, rtol=1e-4)

    print("KERNEL_OK")
</pallas_src>

<mosaic_0001>
module attributes {stable_mosaic.version = 11 : i64} {
  func.func @gcn_group_kernel(%arg0: i32, %arg1: memref<1x256x256xbf16, #tpu.memory_space<vmem>>, %arg2: memref<1x256x8xbf16, #tpu.memory_space<vmem>>, %arg3: memref<1x16x256xbf16, #tpu.memory_space<vmem>>, %arg4: memref<8x32xbf16, #tpu.memory_space<vmem>>, %arg5: memref<1x32xf32, #tpu.memory_space<vmem>>, %arg6: memref<32x128xbf16, #tpu.memory_space<vmem>>, %arg7: memref<1x128xf32, #tpu.memory_space<vmem>>, %arg8: memref<1x16x128xf32, #tpu.memory_space<vmem>>) attributes {dimension_semantics = [#tpu.dimension_semantics<parallel>], iteration_bounds = array<i64: 2>, scalar_prefetch = 0 : i64, scratch_operands = 0 : i64, tpu.core_type = #tpu.core_type<tc>, window_params = [{transform_indices = @transform_0, window_bounds = array<i64: 1, 256, 256>}, {transform_indices = @transform_1, window_bounds = array<i64: 1, 256, 8>}, {transform_indices = @transform_2, window_bounds = array<i64: 1, 16, 256>}, {pipeline_mode = #tpu.pipeline_mode<synchronous>, transform_indices = @transform_3, window_bounds = array<i64: 8, 32>}, {pipeline_mode = #tpu.pipeline_mode<synchronous>, transform_indices = @transform_4, window_bounds = array<i64: 1, 32>}, {pipeline_mode = #tpu.pipeline_mode<synchronous>, transform_indices = @transform_5, window_bounds = array<i64: 32, 128>}, {pipeline_mode = #tpu.pipeline_mode<synchronous>, transform_indices = @transform_6, window_bounds = array<i64: 1, 128>}, {transform_indices = @transform_7, window_bounds = array<i64: 1, 16, 128>}]} {
    %c0 = arith.constant 0 : index
    %c0_0 = arith.constant 0 : index
    %c0_1 = arith.constant 0 : index
    %0 = vector.load %arg1[%c0, %c0_0, %c0_1] : memref<1x256x256xbf16, #tpu.memory_space<vmem>>, vector<1x256x256xbf16>
    %1 = vector.shape_cast %0 : vector<1x256x256xbf16> to vector<256x256xbf16>
    %c0_2 = arith.constant 0 : index
    %c0_3 = arith.constant 0 : index
    %c0_4 = arith.constant 0 : index
    %2 = vector.load %arg2[%c0_2, %c0_3, %c0_4] : memref<1x256x8xbf16, #tpu.memory_space<vmem>>, vector<1x256x8xbf16>
    %3 = vector.shape_cast %2 : vector<1x256x8xbf16> to vector<256x8xbf16>
    %c0_5 = arith.constant 0 : index
    %c0_6 = arith.constant 0 : index
    %c0_7 = arith.constant 0 : index
    %4 = vector.load %arg3[%c0_5, %c0_6, %c0_7] : memref<1x16x256xbf16, #tpu.memory_space<vmem>>, vector<1x16x256xbf16>
    %5 = vector.shape_cast %4 : vector<1x16x256xbf16> to vector<16x256xbf16>
    %c0_8 = arith.constant 0 : index
    %c0_9 = arith.constant 0 : index
    %6 = vector.load %arg4[%c0_8, %c0_9] : memref<8x32xbf16, #tpu.memory_space<vmem>>, vector<8x32xbf16>
    %c0_10 = arith.constant 0 : index
    %c0_11 = arith.constant 0 : index
    %7 = vector.load %arg6[%c0_10, %c0_11] : memref<32x128xbf16, #tpu.memory_space<vmem>>, vector<32x128xbf16>
    %cst = arith.constant dense<0.000000e+00> : vector<256x32xf32>
    %8 = tpu.matmul %3, %6, %cst {dimension_numbers = #tpu.dot_dimension_numbers<[1], [0], [0], [1], [0, 0, 1, 1], [], []>} : vector<256x8xbf16>, vector<8x32xbf16>, vector<256x32xf32> -> vector<256x32xf32>
    %9 = arith.truncf %8 : vector<256x32xf32> to vector<256x32xbf16>
    %cst_12 = arith.constant dense<0.000000e+00> : vector<256x32xf32>
    %10 = tpu.matmul %1, %9, %cst_12 {dimension_numbers = #tpu.dot_dimension_numbers<[1], [0], [0], [1], [0, 0, 1, 1], [], []>} : vector<256x256xbf16>, vector<256x32xbf16>, vector<256x32xf32> -> vector<256x32xf32>
    %c0_13 = arith.constant 0 : index
    %c0_14 = arith.constant 0 : index
    %11 = vector.load %arg5[%c0_13, %c0_14] : memref<1x32xf32, #tpu.memory_space<vmem>>, vector<1x32xf32>
    %12 = vector.broadcast %11 : vector<1x32xf32> to vector<256x32xf32>
    %13 = arith.addf %10, %12 : vector<256x32xf32>
    %cst_15 = arith.constant 0.000000e+00 : f32
    %14 = vector.broadcast %cst_15 : f32 to vector<256x32xf32>
    %15 = arith.maximumf %13, %14 : vector<256x32xf32>
    %16 = arith.truncf %15 : vector<256x32xf32> to vector<256x32xbf16>
    %cst_16 = arith.constant dense<0.000000e+00> : vector<16x32xf32>
    %17 = tpu.matmul %5, %16, %cst_16 {dimension_numbers = #tpu.dot_dimension_numbers<[1], [0], [0], [1], [0, 0, 1, 1], [], []>} : vector<16x256xbf16>, vector<256x32xbf16>, vector<16x32xf32> -> vector<16x32xf32>
    %18 = arith.truncf %17 : vector<16x32xf32> to vector<16x32xbf16>
    %cst_17 = arith.constant dense<0.000000e+00> : vector<16x128xf32>
    %19 = tpu.matmul %18, %7, %cst_17 {dimension_numbers = #tpu.dot_dimension_numbers<[1], [0], [0], [1], [0, 0, 1, 1], [], []>} : vector<16x32xbf16>, vector<32x128xbf16>, vector<16x128xf32> -> vector<16x128xf32>
    %c0_18 = arith.constant 0 : index
    %c0_19 = arith.constant 0 : index
    %20 = vector.load %arg7[%c0_18, %c0_19] : memref<1x128xf32, #tpu.memory_space<vmem>>, vector<1x128xf32>
    %21 = vector.broadcast %20 : vector<1x128xf32> to vector<16x128xf32>
    %22 = arith.addf %19, %21 : vector<16x128xf32>
    %c0_20 = arith.constant 0 : index
    %c0_21 = arith.constant 0 : index
    %c0_22 = arith.constant 0 : index
    %23 = vector.load %arg8[%c0_20, %c0_21, %c0_22] : memref<1x16x128xf32, #tpu.memory_space<vmem>>, vector<1x16x128xf32>
    %24 = vector.shape_cast %23 : vector<1x16x128xf32> to vector<16x128xf32>
    %25 = vector.shape_cast %22 : vector<16x128xf32> to vector<1x16x128xf32>
    tpu.vector_store %arg8[%c0_20, %c0_21, %c0_22], %25 {strides = array<i32>} : memref<1x16x128xf32, #tpu.memory_space<vmem>>, vector<1x16x128xf32>,
    return
  }
  func.func @transform_0(%arg0: i32) -> (i32, i32, i32) {
    %c0_i32 = arith.constant 0 : i32
    %c0_i32_0 = arith.constant 0 : i32
    %c0_i32_1 = arith.constant 0 : i32
    return %arg0, %c0_i32, %c0_i32_0 : i32, i32, i32
  }
  func.func @transform_1(%arg0: i32) -> (i32, i32, i32) {
    %c0_i32 = arith.constant 0 : i32
    %c0_i32_0 = arith.constant 0 : i32
    %c0_i32_1 = arith.constant 0 : i32
    return %arg0, %c0_i32, %c0_i32_0 : i32, i32, i32
  }
  func.func @transform_2(%arg0: i32) -> (i32, i32, i32) {
    %c0_i32 = arith.constant 0 : i32
    %c0_i32_0 = arith.constant 0 : i32
    %c0_i32_1 = arith.constant 0 : i32
    return %arg0, %c0_i32, %c0_i32_0 : i32, i32, i32
  }
  func.func @transform_3(%arg0: i32) -> (i32, i32) {
    %c0_i32 = arith.constant 0 : i32
    %c0_i32_0 = arith.constant 0 : i32
    %c0_i32_1 = arith.constant 0 : i32
    return %c0_i32, %c0_i32_0 : i32, i32
  }
  func.func @transform_4(%arg0: i32) -> (i32, i32) {
    %c0_i32 = arith.constant 0 : i32
    %c0_i32_0 = arith.constant 0 : i32
    %c0_i32_1 = arith.constant 0 : i32
    return %c0_i32, %c0_i32_0 : i32, i32
  }
  func.func @transform_5(%arg0: i32) -> (i32, i32) {
    %c0_i32 = arith.constant 0 : i32
    %c0_i32_0 = arith.constant 0 : i32
    %c0_i32_1 = arith.constant 0 : i32
    return %c0_i32, %c0_i32_0 : i32, i32
  }
  func.func @transform_6(%arg0: i32) -> (i32, i32) {
    %c0_i32 = arith.constant 0 : i32
    %c0_i32_0 = arith.constant 0 : i32
    %c0_i32_1 = arith.constant 0 : i32
    return %c0_i32, %c0_i32_0 : i32, i32
  }
  func.func @transform_7(%arg0: i32) -> (i32, i32, i32) {
    %c0_i32 = arith.constant 0 : i32
    %c0_i32_0 = arith.constant 0 : i32
    %c0_i32_1 = arith.constant 0 : i32
    return %arg0, %c0_i32, %c0_i32_0 : i32, i32, i32
  }
}

</mosaic_0001>

<llo_original>
// kernel: tpu_custom_call.1
$region0: #{tpu_custom_call.1}
  #allocation0 [shape = 'u32[]', space=smem, size = 0x4, offset = 0x4, fixed_abs, tag = 'smem constant byte address 0x4 - core index']
  #allocation1 [shape = 'u32[144,128]{1,0:T(1,128)}', space=vmem, size = 0x12000, scoped, tag = 'internal scratch']
  %s0 = inlined_call_operand.hbm [shape: bf16[2,256,256], index: 0, kind: input, shape index: {}]
  %s1 = inlined_call_operand.vmem [shape: bf16[2,256,8], index: 1, kind: input, shape index: {}]
  %s2 = inlined_call_operand.vmem [shape: bf16[2,16,256], index: 2, kind: input, shape index: {}]
  %s3 = inlined_call_operand.vmem [shape: bf16[8,32], index: 3, kind: input, shape index: {}]
  %s4 = inlined_call_operand.vmem [shape: f32[1,32], index: 4, kind: input, shape index: {}]
  %s5 = inlined_call_operand.vmem [shape: bf16[32,128], index: 5, kind: input, shape index: {}]
  %s6 = inlined_call_operand.vmem [shape: f32[1,128], index: 6, kind: input, shape index: {}]
  %s7 = inlined_call_operand.hbm [shape: f32[2,16,128], index: 7, kind: output, shape index: {}]
  %s8 = sld [smem:[#allocation0]]
  $region65: #{tpu_custom_call.1} parent=0
    _
  %s10 = ssub.s32 1, %s8
  %s11 = scalar_select 0, %s10, %s8
  $region1: #{tpu_custom_call.1} parent=0
    #allocation2 [shape = 'u8[262144]{0}', space=vmem, size = 0x40000, scoped, tag = 'input window, operand 0']
    #allocation3 [shape = 's32[2]{0}', space=sflag, size = 0x8, scoped, tag = 'scoped memory for tpu_custom_call.1']
    #allocation4 [shape = 's32[2]{0}', space=sflag, size = 0x8, scoped, tag = 'scoped memory for tpu_custom_call.1']
    #allocation5 [shape = 'u8[16384]{0}', space=vmem, size = 0x4000, scoped, tag = 'output window, operand 0']
    %12 = vsyncpa [#allocation3], 0
    %s13 = scalar_lea.sflag [#allocation3], 1
    %14 = vsyncpa %s13, 0
    %15 = vsyncpa [#allocation4], 0
    %s16 = scalar_lea.sflag [#allocation4], 1
    %17 = vsyncpa %s16, 0
    loop: start=0, step=1, limit=4
    $region2: #{tpu_custom_call.1} parent=1 // loop_pre_header
      _
    $region3: #{tpu_custom_call.1} parent=1 // loop_header
      %s19 = sphi 0, %s23
      %p20 = scmp.ge.s32.totalorder %s19, 4
      %s29 = sphi 0, %s31
      %s32 = sphi 0, %s29
      %s33 = sphi 0, %s32
      %s49 = sphi 0, %s33
      %s55 = sphi 0, %s57
      %s58 = sphi 0, %s55
      %s59 = sphi 0, %s58
      %s75 = sphi 0, %s59
      %s81 = sphi 0, %s83
      %s84 = sphi 0, %s81
      %s85 = sphi 0, %s84
      %s101 = sphi 0, %s85
      %s105 = sphi 0, %s105
      %s107 = sphi 0, %s105
      %s108 = sphi 0, %s107
      %s122 = sphi 0, %s108
      %s126 = sphi 0, %s126
      %s128 = sphi 0, %s126
      %s129 = sphi 0, %s128
      %s143 = sphi 0, %s129
      %s147 = sphi 0, %s147
      %s149 = sphi 0, %s147
      %s150 = sphi 0, %s149
      %s164 = sphi 0, %s150
      %s168 = sphi 0, %s168
      %s170 = sphi 0, %s168
      %s171 = sphi 0, %s170
      %s185 = sphi 0, %s171
      %s191 = sphi 0, %s193
      %s194 = sphi 0, %s191
      %s195 = sphi 0, %s194
      %s211 = sphi 0, %s195
    $region4: #{tpu_custom_call.1} parent=1 // loop_header_branch
      %22 = sbr.rel (%p20) target = $region8
    $region5: #{tpu_custom_call.1} parent=1 // loop_body
      %s24 = ssub.s32 %s19, 1
      %s25 = ssub.s32 %s19, 2
      %s26 = sadd.s32 %s19, 1
      %s27 = ssub.s32 %s19, %s26
      %p28 = scmp.eq.s32.totalorder %s27, 0
      %s30 = sadd.s32 %s29, 1
      %s31 = scalar_select %p28, %s29, %s30
      %p34 = pneg %p28
      %p35 = scmp.eq.s32.totalorder %s19, 1
      %p36 = por %p34, %p35
      %p37 = scmp.ne.s32.totalorder %s29, %s32
      %p38 = scmp.eq.s32.totalorder %s19, 0
      %p39 = por %p37, %p38
      %p40 = scmp.ne.s32.totalorder %s29, %s32
      %p41 = scmp.eq.s32.totalorder %s24, 1
      %p42 = por %p40, %p41
      %p43 = scmp.ne.s32.totalorder %s32, %s33
      %p44 = scmp.eq.s32.totalorder %s24, 0
      %p45 = por %p43, %p44
      %p46 = scmp.ne.s32.totalorder %s32, %s33
      %p47 = scmp.eq.s32.totalorder %s25, 1
      %p48 = por %p46, %p47
      %p50 = scmp.ne.s32.totalorder %s33, %s49
      %p51 = scmp.eq.s32.totalorder %s25, 0
      %p52 = por %p50, %p51
      %s53 = ssub.s32 %s19, %s26
      %p54 = scmp.eq.s32.totalorder %s53, 0
      %s56 = sadd.s32 %s55, 1
      %s57 = scalar_select %p54, %s55, %s56
      %p60 = pneg %p54
      %p61 = scmp.eq.s32.totalorder %s19, 1
      %p62 = por %p60, %p61
      %p63 = scmp.ne.s32.totalorder %s55, %s58
      %p64 = scmp.eq.s32.totalorder %s19, 0
      %p65 = por %p63, %p64
      %p66 = scmp.ne.s32.totalorder %s55, %s58
      %p67 = scmp.eq.s32.totalorder %s24, 1
      %p68 = por %p66, %p67
      %p69 = scmp.ne.s32.totalorder %s58, %s59
      %p70 = scmp.eq.s32.totalorder %s24, 0
      %p71 = por %p69, %p70
      %p72 = scmp.ne.s32.totalorder %s58, %s59
      %p73 = scmp.eq.s32.totalorder %s25, 1
      %p74 = por %p72, %p73
      %p76 = scmp.ne.s32.totalorder %s59, %s75
      %p77 = scmp.eq.s32.totalorder %s25, 0
      %p78 = por %p76, %p77
      %s79 = ssub.s32 %s19, %s26
      %p80 = scmp.eq.s32.totalorder %s79, 0
      %s82 = sadd.s32 %s81, 1
      %s83 = scalar_select %p80, %s81, %s82
      %p86 = pneg %p80
      %p87 = scmp.eq.s32.totalorder %s19, 1
      %p88 = por %p86, %p87
      %p89 = scmp.ne.s32.totalorder %s81, %s84
      %p90 = scmp.eq.s32.totalorder %s19, 0
      %p91 = por %p89, %p90
      %p92 = scmp.ne.s32.totalorder %s81, %s84
      %p93 = scmp.eq.s32.totalorder %s24, 1
      %p94 = por %p92, %p93
      %p95 = scmp.ne.s32.totalorder %s84, %s85
      %p96 = scmp.eq.s32.totalorder %s24, 0
      %p97 = por %p95, %p96
      %p98 = scmp.ne.s32.totalorder %s84, %s85
      %p99 = scmp.eq.s32.totalorder %s25, 1
      %p100 = por %p98, %p99
      %p102 = scmp.ne.s32.totalorder %s85, %s101
      %p103 = scmp.eq.s32.totalorder %s25, 0
      %p104 = por %p102, %p103
      %s106 = sadd.s32 %s105, 1
      %p109 = scmp.eq.s32.totalorder %s19, 1
      %p110 = scmp.ne.s32.totalorder %s105, %s107
      %p111 = scmp.eq.s32.totalorder %s19, 0
      %p112 = por %p110, %p111
      %p113 = scmp.ne.s32.totalorder %s105, %s107
      %p114 = scmp.eq.s32.totalorder %s24, 1
      %p115 = por %p113, %p114
      %p116 = scmp.ne.s32.totalorder %s107, %s108
      %p117 = scmp.eq.s32.totalorder %s24, 0
      %p118 = por %p116, %p117
      %p119 = scmp.ne.s32.totalorder %s107, %s108
      %p120 = scmp.eq.s32.totalorder %s25, 1
      %p121 = por %p119, %p120
      %p123 = scmp.ne.s32.totalorder %s108, %s122
      %p124 = scmp.eq.s32.totalorder %s25, 0
      %p125 = por %p123, %p124
      %s127 = sadd.s32 %s126, 1
      %p130 = scmp.eq.s32.totalorder %s19, 1
      %p131 = scmp.ne.s32.totalorder %s126, %s128
      %p132 = scmp.eq.s32.totalorder %s19, 0
      %p133 = por %p131, %p132
      %p134 = scmp.ne.s32.totalorder %s126, %s128
      %p135 = scmp.eq.s32.totalorder %s24, 1
      %p136 = por %p134, %p135
      %p137 = scmp.ne.s32.totalorder %s128, %s129
      %p138 = scmp.eq.s32.totalorder %s24, 0
      %p139 = por %p137, %p138
      %p140 = scmp.ne.s32.totalorder %s128, %s129
      %p141 = scmp.eq.s32.totalorder %s25, 1
      %p142 = por %p140, %p141
      %p144 = scmp.ne.s32.totalorder %s129, %s143
      %p145 = scmp.eq.s32.totalorder %s25, 0
      %p146 = por %p144, %p145
      %s148 = sadd.s32 %s147, 1
      %p151 = scmp.eq.s32.totalorder %s19, 1
      %p152 = scmp.ne.s32.totalorder %s147, %s149
      %p153 = scmp.eq.s32.totalorder %s19, 0
      %p154 = por %p152, %p153
      %p155 = scmp.ne.s32.totalorder %s147, %s149
      %p156 = scmp.eq.s32.totalorder %s24, 1
      %p157 = por %p155, %p156
      %p158 = scmp.ne.s32.totalorder %s149, %s150
      %p159 = scmp.eq.s32.totalorder %s24, 0
      %p160 = por %p158, %p159
      %p161 = scmp.ne.s32.totalorder %s149, %s150
      %p162 = scmp.eq.s32.totalorder %s25, 1
      %p163 = por %p161, %p162
      %p165 = scmp.ne.s32.totalorder %s150, %s164
      %p166 = scmp.eq.s32.totalorder %s25, 0
      %p167 = por %p165, %p166
      %s169 = sadd.s32 %s168, 1
      %p172 = scmp.eq.s32.totalorder %s19, 1
      %p173 = scmp.ne.s32.totalorder %s168, %s170
      %p174 = scmp.eq.s32.totalorder %s19, 0
      %p175 = por %p173, %p174
      %p176 = scmp.ne.s32.totalorder %s168, %s170
      %p177 = scmp.eq.s32.totalorder %s24, 1
      %p178 = por %p176, %p177
      %p179 = scmp.ne.s32.totalorder %s170, %s171
      %p180 = scmp.eq.s32.totalorder %s24, 0
      %p181 = por %p179, %p180
      %p182 = scmp.ne.s32.totalorder %s170, %s171
      %p183 = scmp.eq.s32.totalorder %s25, 1
      %p184 = por %p182, %p183
      %p186 = scmp.ne.s32.totalorder %s171, %s185
      %p187 = scmp.eq.s32.totalorder %s25, 0
      %p188 = por %p186, %p187
      %s189 = ssub.s32 %s19, %s26
      %p190 = scmp.eq.s32.totalorder %s189, 0
      %s192 = sadd.s32 %s191, 1
      %s193 = scalar_select %p190, %s191, %s192
      %p196 = pneg %p190
      %p197 = scmp.eq.s32.totalorder %s19, 1
      %p198 = por %p196, %p197
      %p199 = scmp.ne.s32.totalorder %s191, %s194
      %p200 = scmp.eq.s32.totalorder %s19, 0
      %p201 = por %p199, %p200
      %p202 = scmp.ne.s32.totalorder %s191, %s194
      %p203 = scmp.eq.s32.totalorder %s24, 1
      %p204 = por %p202, %p203
      %p205 = scmp.ne.s32.totalorder %s194, %s195
      %p206 = scmp.eq.s32.totalorder %s24, 0
      %p207 = por %p205, %p206
      %p208 = scmp.ne.s32.totalorder %s194, %s195
      %p209 = scmp.eq.s32.totalorder %s25, 1
      %p210 = por %p208, %p209
      %p212 = scmp.ne.s32.totalorder %s195, %s211
      %p213 = scmp.eq.s32.totalorder %s25, 0
      %p214 = por %p212, %p213
      %p215 = scmp.le.s32.totalorder 1, %s19
      %p216 = scmp.lt.s32.totalorder %s19, 3
      %p217 = pnand %p215, %p216
      %p218 = pneg %p217
      // Predicated region
      $region9: #{tpu_custom_call.1} parent=5 // pred_check
        _
      $region10: #{tpu_custom_call.1} parent=5 // pred_check_branch
        %220 = sbr.rel (%p217) target = $region12
      $region11: #{tpu_custom_call.1} parent=5 // pred_region
        %s221 = ssub.s32 %s19, 1
        // Predicated region
        $region13: #{tpu_custom_call.1} parent=11 // pred_check
          %p222 = pneg %p118
        $region14: #{tpu_custom_call.1} parent=11 // pred_check_branch
          %224 = sbr.rel (%p222) target = $region16
        $region15: #{tpu_custom_call.1} parent=11 // pred_region
          _
        $region16: #{tpu_custom_call.1} parent=11 // pred_fallthru
          _
        // Predicated region
        $region17: #{tpu_custom_call.1} parent=11 // pred_check
          %p225 = pneg %p139
        $region18: #{tpu_custom_call.1} parent=11 // pred_check_branch
          %227 = sbr.rel (%p225) target = $region20
        $region19: #{tpu_custom_call.1} parent=11 // pred_region
          _
        $region20: #{tpu_custom_call.1} parent=11 // pred_fallthru
          _
        // Predicated region
        $region21: #{tpu_custom_call.1} parent=11 // pred_check
          %p228 = pneg %p160
        $region22: #{tpu_custom_call.1} parent=11 // pred_check_branch
          %230 = sbr.rel (%p228) target = $region24
        $region23: #{tpu_custom_call.1} parent=11 // pred_region
          _
        $region24: #{tpu_custom_call.1} parent=11 // pred_fallthru
          _
        // Predicated region
        $region25: #{tpu_custom_call.1} parent=11 // pred_check
          %p231 = pneg %p181
        $region26: #{tpu_custom_call.1} parent=11 // pred_check_branch
          %233 = sbr.rel (%p231) target = $region28
        $region27: #{tpu_custom_call.1} parent=11 // pred_region
          _
        $region28: #{tpu_custom_call.1} parent=11 // pred_fallthru
          _
      $region12: #{tpu_custom_call.1} parent=5 // pred_fallthru
        _
      %p234 = scmp.lt.s32.totalorder %s19, 2
      // Predicated region
      $region29: #{tpu_custom_call.1} parent=5 // pred_check
        %p235 = pneg %p234
      $region30: #{tpu_custom_call.1} parent=5 // pred_check_branch
        %237 = sbr.rel (%p235) target = $region32
      $region31: #{tpu_custom_call.1} parent=5 // pred_region
        // Predicated region
        $region33: #{tpu_custom_call.1} parent=31 // pred_check
          %p238 = pneg %p39
        $region34: #{tpu_custom_call.1} parent=31 // pred_check_branch
          %240 = sbr.rel (%p238) target = $region36
        $region35: #{tpu_custom_call.1} parent=31 // pred_region
          %s241 = sand.u32 %s29, 1
          %s242 = scalar_lea.sflag [#allocation3], %s241
          %s243 = sand.u32 %s29, 1
          %s244 = smul.addr %s243, 256
          %s245 = scalar_lea.vmem [#allocation2], %s244
          %s247 = ssub.s32 4096, 4096
          %248 = vsyncadd %s242, %s247
          %s249 = smul.addr %s19, 64
          %s250 = smul.addr %s249, 64
          %s251 = scalar_lea.hbm %s0, %s250
          %s252 = sshll.u32 %s245, 4
          %s253 = int_to_ptr.vmem [resolvable:$true] %s252
          %258 = dma.hbm_to_vmem [thread:$0]  %s251, 4096, %s253, %s242, 128, 128, 8
        $region36: #{tpu_custom_call.1} parent=31 // pred_fallthru
          _
        // Predicated region
        $region37: #{tpu_custom_call.1} parent=31 // pred_check
          %p259 = pneg %p65
        $region38: #{tpu_custom_call.1} parent=31 // pred_check_branch
          %261 = sbr.rel (%p259) target = $region40
        $region39: #{tpu_custom_call.1} parent=31 // pred_region
          %p262 = scmp.lt.s32.totalorder %s19, 1
          %s263 = scalar_select %p262, %s19, 1
          %s264 = smul.addr %s263, 32
          %s265 = smul.addr %s264, 4
          %s266 = scalar_lea.vmem %s1, %s265
        $region40: #{tpu_custom_call.1} parent=31 // pred_fallthru
          _
        // Predicated region
        $region41: #{tpu_custom_call.1} parent=31 // pred_check
          %p267 = pneg %p91
        $region42: #{tpu_custom_call.1} parent=31 // pred_check_branch
          %269 = sbr.rel (%p267) target = $region44
        $region43: #{tpu_custom_call.1} parent=31 // pred_region
          %p270 = scmp.lt.s32.totalorder %s19, 1
          %s271 = scalar_select %p270, %s19, 1
          %s272 = smul.addr %s271, 4
          %s273 = smul.addr %s272, 4
          %s274 = scalar_lea.vmem %s2, %s273
        $region44: #{tpu_custom_call.1} parent=31 // pred_fallthru
          _
      $region32: #{tpu_custom_call.1} parent=5 // pred_fallthru
        _
      %p275 = scmp.le.s32.totalorder 1, %s19
      %p276 = scmp.lt.s32.totalorder %s19, 3
      %p277 = pnand %p275, %p276
      %p278 = pneg %p277
      // Predicated region
      $region45: #{tpu_custom_call.1} parent=5 // pred_check
        _
      $region46: #{tpu_custom_call.1} parent=5 // pred_check_branch
        %280 = sbr.rel (%p277) target = $region48
      $region47: #{tpu_custom_call.1} parent=5 // pred_region
        %s281 = ssub.s32 %s19, 1
        %s282 = sand.u32 %s32, 1
        %s283 = scalar_lea.sflag [#allocation3], %s282
        %s284 = sand.u32 %s32, 1
        %s285 = smul.addr %s284, 256
        %s286 = scalar_lea.vmem [#allocation2], %s285
        // Predicated region
        $region49: #{tpu_custom_call.1} parent=47 // pred_check
          %p287 = pneg %p45
        $region50: #{tpu_custom_call.1} parent=47 // pred_check_branch
          %289 = sbr.rel (%p287) target = $region52
        $region51: #{tpu_custom_call.1} parent=47 // pred_region
          %290 = dma.done %s283, 4096
        $region52: #{tpu_custom_call.1} parent=47 // pred_fallthru
          _
        %s291 = sand.u32 %s32, 1
        %s292 = scalar_lea.sflag [#allocation3], %s291
        %s293 = sand.u32 %s32, 1
        %s294 = smul.addr %s293, 256
        %s295 = scalar_lea.vmem [#allocation2], %s294
        %p296 = pneg %p45
        %p297 = pneg %p42
        %p298 = scmp.lt.s32.totalorder %s24, 1
        %s299 = scalar_select %p298, %s24, 1
        %s300 = smul.addr %s299, 32
        %s301 = smul.addr %s300, 4
        %s302 = scalar_lea.vmem %s1, %s301
        %p303 = pneg %p71
        %p304 = pneg %p68
        %p305 = scmp.lt.s32.totalorder %s24, 1
        %s306 = scalar_select %p305, %s24, 1
        %s307 = smul.addr %s306, 4
        %s308 = smul.addr %s307, 4
        %s309 = scalar_lea.vmem %s2, %s308
        %p310 = pneg %p97
        %p311 = pneg %p94
        %p312 = pneg %p118
        %p313 = pneg %p115
        %p314 = pneg %p139
        %p315 = pneg %p136
        %p316 = pneg %p160
        %p317 = pneg %p157
        %p318 = pneg %p181
        %p319 = pneg %p178
        %p320 = pneg %p207
        %p321 = pneg %p204
        %s322 = sand.u32 %s194, 1
        %s323 = scalar_lea.sflag [#allocation4], %s322
        %s324 = sand.u32 %s194, 1
        %s325 = smul.addr %s324, 16
        %s326 = scalar_lea.vmem [#allocation5], %s325
        %p327 = scmp.lt.s32.totalorder %s24, 1
        %s328 = scalar_select %p327, %s24, 1
        %s329 = smul.addr %s328, 32
        %s330 = smul.addr %s329, 4
        %s331 = scalar_lea.vmem %s1, %s330
        %p332 = scmp.lt.s32.totalorder %s24, 1
        %s333 = scalar_select %p332, %s24, 1
        %s334 = smul.addr %s333, 4
        %s335 = smul.addr %s334, 4
        %s336 = scalar_lea.vmem %s2, %s335
        %v338 = vld [vmem:[%s286] sm:$0xff]
        %v339 = vld [vmem:[%s286 + $0x8] sm:$0xff]
        %v340 = vld [vmem:[%s286 + $0x10] sm:$0xff]
        %v341 = vld [vmem:[%s286 + $0x18] sm:$0xff]
        %v342 = vld [vmem:[%s286 + $0x20] sm:$0xff]
        %v343 = vld [vmem:[%s286 + $0x28] sm:$0xff]
        %v344 = vld [vmem:[%s286 + $0x30] sm:$0xff]
        %v345 = vld [vmem:[%s286 + $0x38] sm:$0xff]
        %v346 = vld [vmem:[%s286 + $0x40] sm:$0xff]
        %v347 = vld [vmem:[%s286 + $0x48] sm:$0xff]
        %v348 = vld [vmem:[%s286 + $0x50] sm:$0xff]
        %v349 = vld [vmem:[%s286 + $0x58] sm:$0xff]
        %v350 = vld [vmem:[%s286 + $0x60] sm:$0xff]
        %v351 = vld [vmem:[%s286 + $0x68] sm:$0xff]
        %v352 = vld [vmem:[%s286 + $0x70] sm:$0xff]
        %v353 = vld [vmem:[%s286 + $0x78] sm:$0xff]
        %v354 = vld [vmem:[%s286 + $0x80] sm:$0xff]
        %v355 = vld [vmem:[%s286 + $0x88] sm:$0xff]
        %v356 = vld [vmem:[%s286 + $0x90] sm:$0xff]
        %v357 = vld [vmem:[%s286 + $0x98] sm:$0xff]
        %v358 = vld [vmem:[%s286 + $0xa0] sm:$0xff]
        %v359 = vld [vmem:[%s286 + $0xa8] sm:$0xff]
        %v360 = vld [vmem:[%s286 + $0xb0] sm:$0xff]
        %v361 = vld [vmem:[%s286 + $0xb8] sm:$0xff]
        %v362 = vld [vmem:[%s286 + $0xc0] sm:$0xff]
        %v363 = vld [vmem:[%s286 + $0xc8] sm:$0xff]
        %v364 = vld [vmem:[%s286 + $0xd0] sm:$0xff]
        %v365 = vld [vmem:[%s286 + $0xd8] sm:$0xff]
        %v366 = vld [vmem:[%s286 + $0xe0] sm:$0xff]
        %v367 = vld [vmem:[%s286 + $0xe8] sm:$0xff]
        %v368 = vld [vmem:[%s286 + $0xf0] sm:$0xff]
        %v369 = vld [vmem:[%s286 + $0xf8] sm:$0xff]
        %v370 = vld [vmem:[%s331] sm:$0xf]
        %v371 = vld [vmem:[%s331 + $0x4] sm:$0xf]
        %v372 = vld [vmem:[%s331 + $0x8] sm:$0xf]
        %v373 = vld [vmem:[%s331 + $0xc] sm:$0xf]
        %v374 = vld [vmem:[%s331 + $0x10] sm:$0xf]
        %v375 = vld [vmem:[%s331 + $0x14] sm:$0xf]
        %v376 = vld [vmem:[%s331 + $0x18] sm:$0xf]
        %v377 = vld [vmem:[%s331 + $0x1c] sm:$0xf]
        %v378 = vld [vmem:[%s331 + $0x20] sm:$0xf]
        %v379 = vld [vmem:[%s331 + $0x24] sm:$0xf]
        %v380 = vld [vmem:[%s331 + $0x28] sm:$0xf]
        %v381 = vld [vmem:[%s331 + $0x2c] sm:$0xf]
        %v382 = vld [vmem:[%s331 + $0x30] sm:$0xf]
        %v383 = vld [vmem:[%s331 + $0x34] sm:$0xf]
        %v384 = vld [vmem:[%s331 + $0x38] sm:$0xf]
        %v385 = vld [vmem:[%s331 + $0x3c] sm:$0xf]
        %v386 = vld [vmem:[%s331 + $0x40] sm:$0xf]
        %v387 = vld [vmem:[%s331 + $0x44] sm:$0xf]
        %v388 = vld [vmem:[%s331 + $0x48] sm:$0xf]
        %v389 = vld [vmem:[%s331 + $0x4c] sm:$0xf]
        %v390 = vld [vmem:[%s331 + $0x50] sm:$0xf]
        %v391 = vld [vmem:[%s331 + $0x54] sm:$0xf]
        %v392 = vld [vmem:[%s331 + $0x58] sm:$0xf]
        %v393 = vld [vmem:[%s331 + $0x5c] sm:$0xf]
        %v394 = vld [vmem:[%s331 + $0x60] sm:$0xf]
        %v395 = vld [vmem:[%s331 + $0x64] sm:$0xf]
        %v396 = vld [vmem:[%s331 + $0x68] sm:$0xf]
        %v397 = vld [vmem:[%s331 + $0x6c] sm:$0xf]
        %v398 = vld [vmem:[%s331 + $0x70] sm:$0xf]
        %v399 = vld [vmem:[%s331 + $0x74] sm:$0xf]
        %v400 = vld [vmem:[%s331 + $0x78] sm:$0xf]
        %v401 = vld [vmem:[%s331 + $0x7c] sm:$0xf]
        %v402 = vld [vmem:[%s336] sm:$0xff]
        %v403 = vld [vmem:[%s336 + $0x8] sm:$0xff]
        %v404 = vld [vmem:[%s3] sm:$0xf]
        %v405 = vld [vmem:[%s5] sm:$0xf]
        %v406 = vld [vmem:[%s5 + $0x4] sm:$0xf]
        %v407 = vld [vmem:[%s5 + $0x8] sm:$0xf]
        %v408 = vld [vmem:[%s5 + $0xc] sm:$0xf]
        %v441 = vunpack.c.l.b16 %v370
        %v442 = vunpack.c.l.b16 %v371
        %v443 = vunpack.c.l.b16 %v372
        %v444 = vunpack.c.l.b16 %v373
        %v445 = vunpack.c.l.b16 %v374
        %v446 = vunpack.c.l.b16 %v375
        %v447 = vunpack.c.l.b16 %v376
        %v448 = vunpack.c.l.b16 %v377
        %v449 = vunpack.c.l.b16 %v378
        %v450 = vunpack.c.l.b16 %v379
        %v451 = vunpack.c.l.b16 %v380
        %v452 = vunpack.c.l.b16 %v381
        %v453 = vunpack.c.l.b16 %v382
        %v454 = vunpack.c.l.b16 %v383
        %v455 = vunpack.c.l.b16 %v384
        %v456 = vunpack.c.l.b16 %v385
        %v457 = vunpack.c.l.b16 %v386
        %v458 = vunpack.c.l.b16 %v387
        %v459 = vunpack.c.l.b16 %v388
        %v460 = vunpack.c.l.b16 %v389
        %v461 = vunpack.c.l.b16 %v390
        %v462 = vunpack.c.l.b16 %v391
        %v463 = vunpack.c.l.b16 %v392
        %v464 = vunpack.c.l.b16 %v393
        %v465 = vunpack.c.l.b16 %v394
        %v466 = vunpack.c.l.b16 %v395
        %v467 = vunpack.c.l.b16 %v396
        %v468 = vunpack.c.l.b16 %v397
        %v469 = vunpack.c.l.b16 %v398
        %v470 = vunpack.c.l.b16 %v399
        %v471 = vunpack.c.l.b16 %v400
        %v472 = vunpack.c.l.b16 %v401
        %v473 = vpack.c.b16 %v442, %v441
        %v474 = vpack.c.b16 %v444, %v443
        %v475 = vpack.c.b16 %v446, %v445
        %v476 = vpack.c.b16 %v448, %v447
        %v477 = vpack.c.b16 %v450, %v449
        %v478 = vpack.c.b16 %v452, %v451
        %v479 = vpack.c.b16 %v454, %v453
        %v480 = vpack.c.b16 %v456, %v455
        %v481 = vpack.c.b16 %v458, %v457
        %v482 = vpack.c.b16 %v460, %v459
        %v483 = vpack.c.b16 %v462, %v461
        %v484 = vpack.c.b16 %v464, %v463
        %v485 = vpack.c.b16 %v466, %v465
        %v486 = vpack.c.b16 %v468, %v467
        %v487 = vpack.c.b16 %v470, %v469
        %v488 = vpack.c.b16 %v472, %v471
        %vm489 = vcmask 64512
        %v491 = vsel %vm489, %v473, 0
        %v494 = vsel %vm489, %v474, 0
        %v497 = vsel %vm489, %v475, 0
        %v500 = vsel %vm489, %v476, 0
        %v503 = vsel %vm489, %v477, 0
        %v506 = vsel %vm489, %v478, 0
        %v509 = vsel %vm489, %v479, 0
        %v512 = vsel %vm489, %v480, 0
        %v515 = vsel %vm489, %v481, 0
        %v518 = vsel %vm489, %v482, 0
        %v521 = vsel %vm489, %v483, 0
        %v524 = vsel %vm489, %v484, 0
        %v527 = vsel %vm489, %v485, 0
        %v530 = vsel %vm489, %v486, 0
        %v533 = vsel %vm489, %v487, 0
        %v536 = vsel %vm489, %v488, 0
        %vm538 = vcmask 1043456
        %v540 = vsel %vm538, %v404, 0
        %542 = vmatprep.subr.bf16.mxu0 0
        %543 = vmatpush1.bf16.msra.mxu0 %v540
        %544 = vmatprep.subr.bf16.mxu0 0
        %545 = vmatpush1.bf16.msra.mxu0 0
        %546 = vmatprep.subr.bf16.mxu0 0
        %547 = vmatpush1.bf16.msra.mxu0 0
        %548 = vmatprep.subr.bf16.mxu0 0
        %549 = vmatpush1.bf16.msra.mxu0 0
        %550 = vmatprep.subr.bf16.mxu0 0
        %551 = vmatpush1.bf16.msra.mxu0 0
        %552 = vmatprep.subr.bf16.mxu0 0
        %553 = vmatpush1.bf16.msra.mxu0 0
        %554 = vmatprep.subr.bf16.mxu0 0
        %555 = vmatpush1.bf16.msra.mxu0 0
        %556 = vmatprep.subr.bf16.mxu0 0
        %557 = vmatpush1.bf16.msra.mxu0 0
        %558 = vmatprep.subr.bf16.mxu0 0
        %559 = vmatpush1.bf16.msra.mxu0 0
        %560 = vmatprep.subr.bf16.mxu0 0
        %561 = vmatpush1.bf16.msra.mxu0 0
        %562 = vmatprep.subr.bf16.mxu0 0
        %563 = vmatpush1.bf16.msra.mxu0 0
        %564 = vmatprep.subr.bf16.mxu0 0
        %565 = vmatpush1.bf16.msra.mxu0 0
        %566 = vmatprep.subr.bf16.mxu0 0
        %567 = vmatpush1.bf16.msra.mxu0 0
        %568 = vmatprep.subr.bf16.mxu0 0
        %569 = vmatpush1.bf16.msra.mxu0 0
        %570 = vmatprep.subr.bf16.mxu0 0
        %571 = vmatpush1.bf16.msra.mxu0 0
        %572 = vmatprep.subr.bf16.mxu0 0
        %573 = vmatpush1.bf16.msra.mxu0 0
        %574 = vmatprep.mubr.bf16.mxu0 0
        %575 = vmatmul.mubr.bf16.gmra.mrb[0].mxu0 %v491
        %v576 = vpop.f32.mrb[0].mxu0
        %v577 = vadd.f32 0.0, %v576
        %v578 = vpop.f32.mrb[0].mxu0
        %v579 = vpop.f32.mrb[0].mxu0
        %v580 = vadd.f32 0.0, %v579
        %v581 = vpop.f32.mrb[0].mxu0
        %582 = vmatprep.mubr.bf16.mxu0 0
        %583 = vmatmul.mubr.bf16.gmra.mrb[0].mxu0 %v494
        %v584 = vpop.f32.mrb[0].mxu0
        %v585 = vadd.f32 0.0, %v584
        %v586 = vpop.f32.mrb[0].mxu0
        %v587 = vpop.f32.mrb[0].mxu0
        %v588 = vadd.f32 0.0, %v587
        %v589 = vpop.f32.mrb[0].mxu0
        %590 = vmatprep.mubr.bf16.mxu0 0
        %591 = vmatmul.mubr.bf16.gmra.mrb[0].mxu0 %v497
        %v592 = vpop.f32.mrb[0].mxu0
        %v593 = vadd.f32 0.0, %v592
        %v594 = vpop.f32.mrb[0].mxu0
        %v595 = vpop.f32.mrb[0].mxu0
        %v596 = vadd.f32 0.0, %v595
        %v597 = vpop.f32.mrb[0].mxu0
        %598 = vmatprep.mubr.bf16.mxu0 0
        %599 = vmatmul.mubr.bf16.gmra.mrb[0].mxu0 %v500
        %v600 = vpop.f32.mrb[0].mxu0
        %v601 = vadd.f32 0.0, %v600
        %v602 = vpop.f32.mrb[0].mxu0
        %v603 = vpop.f32.mrb[0].mxu0
        %v604 = vadd.f32 0.0, %v603
        %v605 = vpop.f32.mrb[0].mxu0
        %606 = vmatprep.mubr.bf16.mxu0 0
        %607 = vmatmul.mubr.bf16.gmra.mrb[0].mxu0 %v503
        %v608 = vpop.f32.mrb[0].mxu0
        %v609 = vadd.f32 0.0, %v608
        %v610 = vpop.f32.mrb[0].mxu0
        %v611 = vpop.f32.mrb[0].mxu0
        %v612 = vadd.f32 0.0, %v611
        %v613 = vpop.f32.mrb[0].mxu0
        %614 = vmatprep.mubr.bf16.mxu0 0
        %615 = vmatmul.mubr.bf16.gmra.mrb[0].mxu0 %v506
        %v616 = vpop.f32.mrb[0].mxu0
        %v617 = vadd.f32 0.0, %v616
        %v618 = vpop.f32.mrb[0].mxu0
        %v619 = vpop.f32.mrb[0].mxu0
        %v620 = vadd.f32 0.0, %v619
        %v621 = vpop.f32.mrb[0].mxu0
        %622 = vmatprep.mubr.bf16.mxu0 0
        %623 = vmatmul.mubr.bf16.gmra.mrb[0].mxu0 %v509
        %v624 = vpop.f32.mrb[0].mxu0
        %v625 = vadd.f32 0.0, %v624
        %v626 = vpop.f32.mrb[0].mxu0
        %v627 = vpop.f32.mrb[0].mxu0
        %v628 = vadd.f32 0.0, %v627
        %v629 = vpop.f32.mrb[0].mxu0
        %630 = vmatprep.mubr.bf16.mxu0 0
        %631 = vmatmul.mubr.bf16.gmra.mrb[0].mxu0 %v512
        %v632 = vpop.f32.mrb[0].mxu0
        %v633 = vadd.f32 0.0, %v632
        %v634 = vpop.f32.mrb[0].mxu0
        %v635 = vpop.f32.mrb[0].mxu0
        %v636 = vadd.f32 0.0, %v635
        %v637 = vpop.f32.mrb[0].mxu0
        %638 = vmatprep.mubr.bf16.mxu0 0
        %639 = vmatmul.mubr.bf16.gmra.mrb[0].mxu0 %v515
        %v640 = vpop.f32.mrb[0].mxu0
        %v641 = vadd.f32 0.0, %v640
        %v642 = vpop.f32.mrb[0].mxu0
        %v643 = vpop.f32.mrb[0].mxu0
        %v644 = vadd.f32 0.0, %v643
        %v645 = vpop.f32.mrb[0].mxu0
        %646 = vmatprep.mubr.bf16.mxu0 0
        %647 = vmatmul.mubr.bf16.gmra.mrb[0].mxu0 %v518
        %v648 = vpop.f32.mrb[0].mxu0
        %v649 = vadd.f32 0.0, %v648
        %v650 = vpop.f32.mrb[0].mxu0
        %v651 = vpop.f32.mrb[0].mxu0
        %v652 = vadd.f32 0.0, %v651
        %v653 = vpop.f32.mrb[0].mxu0
        %654 = vmatprep.mubr.bf16.mxu0 0
        %655 = vmatmul.mubr.bf16.gmra.mrb[0].mxu0 %v521
        %v656 = vpop.f32.mrb[0].mxu0
        %v657 = vadd.f32 0.0, %v656
        %v658 = vpop.f32.mrb[0].mxu0
        %v659 = vpop.f32.mrb[0].mxu0
        %v660 = vadd.f32 0.0, %v659
        %v661 = vpop.f32.mrb[0].mxu0
        %662 = vmatprep.mubr.bf16.mxu0 0
        %663 = vmatmul.mubr.bf16.gmra.mrb[0].mxu0 %v524
        %v664 = vpop.f32.mrb[0].mxu0
        %v665 = vadd.f32 0.0, %v664
        %v666 = vpop.f32.mrb[0].mxu0
        %v667 = vpop.f32.mrb[0].mxu0
        %v668 = vadd.f32 0.0, %v667
        %v669 = vpop.f32.mrb[0].mxu0
        %670 = vmatprep.mubr.bf16.mxu0 0
        %671 = vmatmul.mubr.bf16.gmra.mrb[0].mxu0 %v527
        %v672 = vpop.f32.mrb[0].mxu0
        %v673 = vadd.f32 0.0, %v672
        %v674 = vpop.f32.mrb[0].mxu0
        %v675 = vpop.f32.mrb[0].mxu0
        %v676 = vadd.f32 0.0, %v675
        %v677 = vpop.f32.mrb[0].mxu0
        %678 = vmatprep.mubr.bf16.mxu0 0
        %679 = vmatmul.mubr.bf16.gmra.mrb[0].mxu0 %v530
        %v680 = vpop.f32.mrb[0].mxu0
        %v681 = vadd.f32 0.0, %v680
        %v682 = vpop.f32.mrb[0].mxu0
        %v683 = vpop.f32.mrb[0].mxu0
        %v684 = vadd.f32 0.0, %v683
        %v685 = vpop.f32.mrb[0].mxu0
        %686 = vmatprep.mubr.bf16.mxu0 0
        %687 = vmatmul.mubr.bf16.gmra.mrb[0].mxu0 %v533
        %v688 = vpop.f32.mrb[0].mxu0
        %v689 = vadd.f32 0.0, %v688
        %v690 = vpop.f32.mrb[0].mxu0
        %v691 = vpop.f32.mrb[0].mxu0
        %v692 = vadd.f32 0.0, %v691
        %v693 = vpop.f32.mrb[0].mxu0
        %694 = vmatprep.mubr.bf16.mxu0 0
        %695 = vmatmul.mubr.bf16.gmra.mrb[0].mxu0 %v536
        %v696 = vpop.f32.mrb[0].mxu0
        %v697 = vadd.f32 0.0, %v696
        %v698 = vpop.f32.mrb[0].mxu0
        %v699 = vpop.f32.mrb[0].mxu0
        %v700 = vadd.f32 0.0, %v699
        %v701 = vpop.f32.mrb[0].mxu0
        %702 = vdwg.mxu0
        %v703 = vpack.c.bf16 %v580, %v577
        %v704 = vpack.c.bf16 %v588, %v585
        %v705 = vpack.c.bf16 %v596, %v593
        %v706 = vpack.c.bf16 %v604, %v601
        %v707 = vpack.c.bf16 %v612, %v609
        %v708 = vpack.c.bf16 %v620, %v617
        %v709 = vpack.c.bf16 %v628, %v625
        %v710 = vpack.c.bf16 %v636, %v633
        %v711 = vpack.c.bf16 %v644, %v641
        %v712 = vpack.c.bf16 %v652, %v649
        %v713 = vpack.c.bf16 %v660, %v657
        %v714 = vpack.c.bf16 %v668, %v665
        %v715 = vpack.c.bf16 %v676, %v673
        %v716 = vpack.c.bf16 %v684, %v681
        %v717 = vpack.c.bf16 %v692, %v689
        %v718 = vpack.c.bf16 %v700, %v697
        %v719 = vld [vmem:[%s4] sm:$0x1]
        %v721 = vlaneseq
        %v722 = vshrl.u32 %v721, 7
        %v723 = vsub.s32 0, %v722
        %v724 = vrot.slane %v719, %v723
        %v758 = vunpack.c.l.b16 %v338
        %v759 = vunpack.c.h.b16 %v338
        %v760 = vunpack.c.l.b16 %v339
        %v761 = vunpack.c.h.b16 %v339
        %v762 = vunpack.c.l.b16 %v340
        %v763 = vunpack.c.h.b16 %v340
        %v764 = vunpack.c.l.b16 %v341
        %v765 = vunpack.c.h.b16 %v341
        %v766 = vunpack.c.l.b16 %v342
        %v767 = vunpack.c.h.b16 %v342
        %v768 = vunpack.c.l.b16 %v343
        %v769 = vunpack.c.h.b16 %v343
        %v770 = vunpack.c.l.b16 %v344
        %v771 = vunpack.c.h.b16 %v344
        %v772 = vunpack.c.l.b16 %v345
        %v773 = vunpack.c.h.b16 %v345
        %v774 = vunpack.c.l.b16 %v346
        %v775 = vunpack.c.h.b16 %v346
        %v776 = vunpack.c.l.b16 %v347
        %v777 = vunpack.c.h.b16 %v347
        %v778 = vunpack.c.l.b16 %v348
        %v779 = vunpack.c.h.b16 %v348
        %v780 = vunpack.c.l.b16 %v349
        %v781 = vunpack.c.h.b16 %v349
        %v782 = vunpack.c.l.b16 %v350
        %v783 = vunpack.c.h.b16 %v350
        %v784 = vunpack.c.l.b16 %v351
        %v785 = vunpack.c.h.b16 %v351
        %v786 = vunpack.c.l.b16 %v352
        %v787 = vunpack.c.h.b16 %v352
        %v788 = vunpack.c.l.b16 %v353
        %v789 = vunpack.c.h.b16 %v353
        %v790 = vunpack.c.l.b16 %v354
        %v791 = vunpack.c.h.b16 %v354
        %v792 = vunpack.c.l.b16 %v355
        %v793 = vunpack.c.h.b16 %v355
        %v794 = vunpack.c.l.b16 %v356
        %v795 = vunpack.c.h.b16 %v356
        %v796 = vunpack.c.l.b16 %v357
        %v797 = vunpack.c.h.b16 %v357
        %v798 = vunpack.c.l.b16 %v358
        %v799 = vunpack.c.h.b16 %v358
        %v800 = vunpack.c.l.b16 %v359
        %v801 = vunpack.c.h.b16 %v359
        %v802 = vunpack.c.l.b16 %v360
        %v803 = vunpack.c.h.b16 %v360
        %v804 = vunpack.c.l.b16 %v361
        %v805 = vunpack.c.h.b16 %v361
        %v806 = vunpack.c.l.b16 %v362
        %v807 = vunpack.c.h.b16 %v362
        %v808 = vunpack.c.l.b16 %v363
        %v809 = vunpack.c.h.b16 %v363
        %v810 = vunpack.c.l.b16 %v364
        %v811 = vunpack.c.h.b16 %v364
        %v812 = vunpack.c.l.b16 %v365
        %v813 = vunpack.c.h.b16 %v365
        %v814 = vunpack.c.l.b16 %v366
        %v815 = vunpack.c.h.b16 %v366
        %v816 = vunpack.c.l.b16 %v367
        %v817 = vunpack.c.h.b16 %v367
        %v818 = vunpack.c.l.b16 %v368
        %v819 = vunpack.c.h.b16 %v368
        %v820 = vunpack.c.l.b16 %v369
        %v821 = vunpack.c.h.b16 %v369
        %v822 = vpack.c.b16 %v760, %v758
        %v823 = vpack.c.b16 %v761, %v759
        %v824 = vpack.c.b16 %v764, %v762
        %v825 = vpack.c.b16 %v765, %v763
        %v826 = vpack.c.b16 %v768, %v766
        %v827 = vpack.c.b16 %v769, %v767
        %v828 = vpack.c.b16 %v772, %v770
        %v829 = vpack.c.b16 %v773, %v771
        %v830 = vpack.c.b16 %v776, %v774
        %v831 = vpack.c.b16 %v777, %v775
        %v832 = vpack.c.b16 %v780, %v778
        %v833 = vpack.c.b16 %v781, %v779
        %v834 = vpack.c.b16 %v784, %v782
        %v835 = vpack.c.b16 %v785, %v783
        %v836 = vpack.c.b16 %v788, %v786
        %v837 = vpack.c.b16 %v789, %v787
        %v838 = vpack.c.b16 %v792, %v790
        %v839 = vpack.c.b16 %v793, %v791
        %v840 = vpack.c.b16 %v796, %v794
        %v841 = vpack.c.b16 %v797, %v795
        %v842 = vpack.c.b16 %v800, %v798
        %v843 = vpack.c.b16 %v801, %v799
        %v844 = vpack.c.b16 %v804, %v802
        %v845 = vpack.c.b16 %v805, %v803
        %v846 = vpack.c.b16 %v808, %v806
        %v847 = vpack.c.b16 %v809, %v807
        %v848 = vpack.c.b16 %v812, %v810
        %v849 = vpack.c.b16 %v813, %v811
        %v850 = vpack.c.b16 %v816, %v814
        %v851 = vpack.c.b16 %v817, %v815
        %v852 = vpack.c.b16 %v820, %v818
        %v853 = vpack.c.b16 %v821, %v819
        %886 = vmatprep.subr.bf16.mxu0 0
        %887 = vmatpush1.bf16.msra.mxu0 %v703
        %888 = vmatprep.subr.bf16.mxu0 0
        %889 = vmatpush1.bf16.msra.mxu0 %v704
        %890 = vmatprep.subr.bf16.mxu0 0
        %891 = vmatpush1.bf16.msra.mxu0 %v705
        %892 = vmatprep.subr.bf16.mxu0 0
        %893 = vmatpush1.bf16.msra.mxu0 %v706
        %894 = vmatprep.subr.bf16.mxu0 0
        %895 = vmatpush1.bf16.msra.mxu0 %v707
        %896 = vmatprep.subr.bf16.mxu0 0
        %897 = vmatpush1.bf16.msra.mxu0 %v708
        %898 = vmatprep.subr.bf16.mxu0 0
        %899 = vmatpush1.bf16.msra.mxu0 %v709
        %900 = vmatprep.subr.bf16.mxu0 0
        %901 = vmatpush1.bf16.msra.mxu0 %v710
        %902 = vmatprep.subr.bf16.mxu0 0
        %903 = vmatpush1.bf16.msra.mxu0 %v711
        %904 = vmatprep.subr.bf16.mxu0 0
        %905 = vmatpush1.bf16.msra.mxu0 %v712
        %906 = vmatprep.subr.bf16.mxu0 0
        %907 = vmatpush1.bf16.msra.mxu0 %v713
        %908 = vmatprep.subr.bf16.mxu0 0
        %909 = vmatpush1.bf16.msra.mxu0 %v714
        %910 = vmatprep.subr.bf16.mxu0 0
        %911 = vmatpush1.bf16.msra.mxu0 %v715
        %912 = vmatprep.subr.bf16.mxu0 0
        %913 = vmatpush1.bf16.msra.mxu0 %v716
        %914 = vmatprep.subr.bf16.mxu0 0
        %915 = vmatpush1.bf16.msra.mxu0 %v717
        %916 = vmatprep.subr.bf16.mxu0 0
        %917 = vmatpush1.bf16.msra.mxu0 %v718
        %918 = vmatprep.mubr.bf16.mxu0 %v823
        %919 = vmatmul.mubr.bf16.gmra.mrb[0].mxu0 %v822
        %v920 = vpop.f32.mrb[0].mxu0
        %v921 = vadd.f32 %v724, %v920
        %v922 = vpop.f32.mrb[0].mxu0
        %v923 = vpop.f32.mrb[0].mxu0
        %v924 = vadd.f32 %v724, %v923
        %v925 = vpop.f32.mrb[0].mxu0
        %926 = vmatprep.mubr.bf16.mxu0 %v825
        %927 = vmatmul.mubr.bf16.gmra.mrb[0].mxu0 %v824
        %v928 = vpop.f32.mrb[0].mxu0
        %v929 = vadd.f32 %v724, %v928
        %v930 = vpop.f32.mrb[0].mxu0
        %v931 = vpop.f32.mrb[0].mxu0
        %v932 = vadd.f32 %v724, %v931
        %v933 = vpop.f32.mrb[0].mxu0
        %934 = vmatprep.mubr.bf16.mxu0 %v827
        %935 = vmatmul.mubr.bf16.gmra.mrb[0].mxu0 %v826
        %v936 = vpop.f32.mrb[0].mxu0
        %v937 = vadd.f32 %v724, %v936
        %v938 = vpop.f32.mrb[0].mxu0
        %v939 = vpop.f32.mrb[0].mxu0
        %v940 = vadd.f32 %v724, %v939
        %v941 = vpop.f32.mrb[0].mxu0
        %942 = vmatprep.mubr.bf16.mxu0 %v829
        %943 = vmatmul.mubr.bf16.gmra.mrb[0].mxu0 %v828
        %v944 = vpop.f32.mrb[0].mxu0
        %v945 = vadd.f32 %v724, %v944
        %v946 = vpop.f32.mrb[0].mxu0
        %v947 = vpop.f32.mrb[0].mxu0
        %v948 = vadd.f32 %v724, %v947
        %v949 = vpop.f32.mrb[0].mxu0
        %950 = vmatprep.mubr.bf16.mxu0 %v831
        %951 = vmatmul.mubr.bf16.gmra.mrb[0].mxu0 %v830
        %v952 = vpop.f32.mrb[0].mxu0
        %v953 = vadd.f32 %v724, %v952
        %v954 = vpop.f32.mrb[0].mxu0
        %v955 = vpop.f32.mrb[0].mxu0
        %v956 = vadd.f32 %v724, %v955
        %v957 = vpop.f32.mrb[0].mxu0
        %958 = vmatprep.mubr.bf16.mxu0 %v833
        %959 = vmatmul.mubr.bf16.gmra.mrb[0].mxu0 %v832
        %v960 = vpop.f32.mrb[0].mxu0
        %v961 = vadd.f32 %v724, %v960
        %v962 = vpop.f32.mrb[0].mxu0
        %v963 = vpop.f32.mrb[0].mxu0
        %v964 = vadd.f32 %v724, %v963
        %v965 = vpop.f32.mrb[0].mxu0
        %966 = vmatprep.mubr.bf16.mxu0 %v835
        %967 = vmatmul.mubr.bf16.gmra.mrb[0].mxu0 %v834
        %v968 = vpop.f32.mrb[0].mxu0
        %v969 = vadd.f32 %v724, %v968
        %v970 = vpop.f32.mrb[0].mxu0
        %v971 = vpop.f32.mrb[0].mxu0
        %v972 = vadd.f32 %v724, %v971
        %v973 = vpop.f32.mrb[0].mxu0
        %974 = vmatprep.mubr.bf16.mxu0 %v837
        %975 = vmatmul.mubr.bf16.gmra.mrb[0].mxu0 %v836
        %v976 = vpop.f32.mrb[0].mxu0
        %v977 = vadd.f32 %v724, %v976
        %v978 = vpop.f32.mrb[0].mxu0
        %v979 = vpop.f32.mrb[0].mxu0
        %v980 = vadd.f32 %v724, %v979
        %v981 = vpop.f32.mrb[0].mxu0
        %982 = vmatprep.mubr.bf16.mxu0 %v839
        %983 = vmatmul.mubr.bf16.gmra.mrb[0].mxu0 %v838
        %v984 = vpop.f32.mrb[0].mxu0
        %v985 = vadd.f32 %v724, %v984
        %v986 = vpop.f32.mrb[0].mxu0
        %v987 = vpop.f32.mrb[0].mxu0
        %v988 = vadd.f32 %v724, %v987
        %v989 = vpop.f32.mrb[0].mxu0
        %990 = vmatprep.mubr.bf16.mxu0 %v841
        %991 = vmatmul.mubr.bf16.gmra.mrb[0].mxu0 %v840
        %v992 = vpop.f32.mrb[0].mxu0
        %v993 = vadd.f32 %v724, %v992
        %v994 = vpop.f32.mrb[0].mxu0
        %v995 = vpop.f32.mrb[0].mxu0
        %v996 = vadd.f32 %v724, %v995
        %v997 = vpop.f32.mrb[0].mxu0
        %998 = vmatprep.mubr.bf16.mxu0 %v843
        %999 = vmatmul.mubr.bf16.gmra.mrb[0].mxu0 %v842
        %v1000 = vpop.f32.mrb[0].mxu0
        %v1001 = vadd.f32 %v724, %v1000
        %v1002 = vpop.f32.mrb[0].mxu0
        %v1003 = vpop.f32.mrb[0].mxu0
        %v1004 = vadd.f32 %v724, %v1003
        %v1005 = vpop.f32.mrb[0].mxu0
        %1006 = vmatprep.mubr.bf16.mxu0 %v845
        %1007 = vmatmul.mubr.bf16.gmra.mrb[0].mxu0 %v844
        %v1008 = vpop.f32.mrb[0].mxu0
        %v1009 = vadd.f32 %v724, %v1008
        %v1010 = vpop.f32.mrb[0].mxu0
        %v1011 = vpop.f32.mrb[0].mxu0
        %v1012 = vadd.f32 %v724, %v1011
        %v1013 = vpop.f32.mrb[0].mxu0
        %1014 = vmatprep.mubr.bf16.mxu0 %v847
        %1015 = vmatmul.mubr.bf16.gmra.mrb[0].mxu0 %v846
        %v1016 = vpop.f32.mrb[0].mxu0
        %v1017 = vadd.f32 %v724, %v1016
        %v1018 = vpop.f32.mrb[0].mxu0
        %v1019 = vpop.f32.mrb[0].mxu0
        %v1020 = vadd.f32 %v724, %v1019
        %v1021 = vpop.f32.mrb[0].mxu0
        %1022 = vmatprep.mubr.bf16.mxu0 %v849
        %1023 = vmatmul.mubr.bf16.gmra.mrb[0].mxu0 %v848
        %v1024 = vpop.f32.mrb[0].mxu0
        %v1025 = vadd.f32 %v724, %v1024
        %v1026 = vpop.f32.mrb[0].mxu0
        %v1027 = vpop.f32.mrb[0].mxu0
        %v1028 = vadd.f32 %v724, %v1027
        %v1029 = vpop.f32.mrb[0].mxu0
        %1030 = vmatprep.mubr.bf16.mxu0 %v851
        %1031 = vmatmul.mubr.bf16.gmra.mrb[0].mxu0 %v850
        %v1032 = vpop.f32.mrb[0].mxu0
        %v1033 = vadd.f32 %v724, %v1032
        %v1034 = vpop.f32.mrb[0].mxu0
        %v1035 = vpop.f32.mrb[0].mxu0
        %v1036 = vadd.f32 %v724, %v1035
        %v1037 = vpop.f32.mrb[0].mxu0
        %1038 = vmatprep.mubr.bf16.mxu0 %v853
        %1039 = vmatmul.mubr.bf16.gmra.mrb[0].mxu0 %v852
        %v1040 = vpop.f32.mrb[0].mxu0
        %v1041 = vadd.f32 %v724, %v1040
        %v1042 = vpop.f32.mrb[0].mxu0
        %v1043 = vpop.f32.mrb[0].mxu0
        %v1044 = vadd.f32 %v724, %v1043
        %v1045 = vpop.f32.mrb[0].mxu0
        %1046 = vdwg.mxu0
        %v1047 = vmax.f32 %v921, 0.0
        %v1048 = vmax.f32 %v924, 0.0
        %v1049 = vmax.f32 %v929, 0.0
        %v1050 = vmax.f32 %v932, 0.0
        %v1051 = vmax.f32 %v937, 0.0
        %v1052 = vmax.f32 %v940, 0.0
        %v1053 = vmax.f32 %v945, 0.0
        %v1054 = vmax.f32 %v948, 0.0
        %v1055 = vmax.f32 %v953, 0.0
        %v1056 = vmax.f32 %v956, 0.0
        %v1057 = vmax.f32 %v961, 0.0
        %v1058 = vmax.f32 %v964, 0.0
        %v1059 = vmax.f32 %v969, 0.0
        %v1060 = vmax.f32 %v972, 0.0
        %v1061 = vmax.f32 %v977, 0.0
        %v1062 = vmax.f32 %v980, 0.0
        %v1063 = vmax.f32 %v985, 0.0
        %v1064 = vmax.f32 %v988, 0.0
        %v1065 = vmax.f32 %v993, 0.0
        %v1066 = vmax.f32 %v996, 0.0
        %v1067 = vmax.f32 %v1001, 0.0
        %v1068 = vmax.f32 %v1004, 0.0
        %v1069 = vmax.f32 %v1009, 0.0
        %v1070 = vmax.f32 %v1012, 0.0
        %v1071 = vmax.f32 %v1017, 0.0
        %v1072 = vmax.f32 %v1020, 0.0
        %v1073 = vmax.f32 %v1025, 0.0
        %v1074 = vmax.f32 %v1028, 0.0
        %v1075 = vmax.f32 %v1033, 0.0
        %v1076 = vmax.f32 %v1036, 0.0
        %v1077 = vmax.f32 %v1041, 0.0
        %v1078 = vmax.f32 %v1044, 0.0
        %v1079 = vpack.c.bf16 %v1048, %v1047
        %v1080 = vpack.c.bf16 %v1050, %v1049
        %v1081 = vpack.c.bf16 %v1052, %v1051
        %v1082 = vpack.c.bf16 %v1054, %v1053
        %v1083 = vpack.c.bf16 %v1056, %v1055
        %v1084 = vpack.c.bf16 %v1058, %v1057
        %v1085 = vpack.c.bf16 %v1060, %v1059
        %v1086 = vpack.c.bf16 %v1062, %v1061
        %v1087 = vpack.c.bf16 %v1064, %v1063
        %v1088 = vpack.c.bf16 %v1066, %v1065
        %v1089 = vpack.c.bf16 %v1068, %v1067
        %v1090 = vpack.c.bf16 %v1070, %v1069
        %v1091 = vpack.c.bf16 %v1072, %v1071
        %v1092 = vpack.c.bf16 %v1074, %v1073
        %v1093 = vpack.c.bf16 %v1076, %v1075
        %v1094 = vpack.c.bf16 %v1078, %v1077
        %v1097 = vunpack.c.l.b16 %v402
        %v1098 = vunpack.c.h.b16 %v402
        %v1099 = vunpack.c.l.b16 %v403
        %v1100 = vunpack.c.h.b16 %v403
        %v1101 = vpack.c.b16 %v1099, %v1097
        %v1102 = vpack.c.b16 %v1100, %v1098
        %1105 = vmatprep.subr.bf16.mxu0 0
        %1106 = vmatpush1.bf16.msra.mxu0 %v1079
        %1107 = vmatprep.subr.bf16.mxu0 0
        %1108 = vmatpush1.bf16.msra.mxu0 %v1080
        %1109 = vmatprep.subr.bf16.mxu0 0
        %1110 = vmatpush1.bf16.msra.mxu0 %v1081
        %1111 = vmatprep.subr.bf16.mxu0 0
        %1112 = vmatpush1.bf16.msra.mxu0 %v1082
        %1113 = vmatprep.subr.bf16.mxu0 0
        %1114 = vmatpush1.bf16.msra.mxu0 %v1083
        %1115 = vmatprep.subr.bf16.mxu0 0
        %1116 = vmatpush1.bf16.msra.mxu0 %v1084
        %1117 = vmatprep.subr.bf16.mxu0 0
        %1118 = vmatpush1.bf16.msra.mxu0 %v1085
        %1119 = vmatprep.subr.bf16.mxu0 0
        %1120 = vmatpush1.bf16.msra.mxu0 %v1086
        %1121 = vmatprep.subr.bf16.mxu0 0
        %1122 = vmatpush1.bf16.msra.mxu0 %v1087
        %1123 = vmatprep.subr.bf16.mxu0 0
        %1124 = vmatpush1.bf16.msra.mxu0 %v1088
        %1125 = vmatprep.subr.bf16.mxu0 0
        %1126 = vmatpush1.bf16.msra.mxu0 %v1089
        %1127 = vmatprep.subr.bf16.mxu0 0
        %1128 = vmatpush1.bf16.msra.mxu0 %v1090
        %1129 = vmatprep.subr.bf16.mxu0 0
        %1130 = vmatpush1.bf16.msra.mxu0 %v1091
        %1131 = vmatprep.subr.bf16.mxu0 0
        %1132 = vmatpush1.bf16.msra.mxu0 %v1092
        %1133 = vmatprep.subr.bf16.mxu0 0
        %1134 = vmatpush1.bf16.msra.mxu0 %v1093
        %1135 = vmatprep.subr.bf16.mxu0 0
        %1136 = vmatpush1.bf16.msra.mxu0 %v1094
        %1137 = vmatprep.mubr.bf16.mxu0 %v1102
        %1138 = vmatmul.mubr.bf16.gmra.mrb[0].mxu0 %v1101
        %v1139 = vpop.f32.mrb[0].mxu0
        %v1140 = vadd.f32 0.0, %v1139
        %v1141 = vpop.f32.mrb[0].mxu0
        %v1142 = vpop.f32.mrb[0].mxu0
        %v1143 = vadd.f32 0.0, %v1142
        %v1144 = vpop.f32.mrb[0].mxu0
        %1145 = vdwg.mxu0
        %v1146 = vpack.c.bf16 %v1143, %v1140
        %v1147 = vld [vmem:[%s6] sm:$0x1]
        %v1149 = vlaneseq
        %v1150 = vshrl.u32 %v1149, 7
        %v1151 = vsub.s32 0, %v1150
        %v1152 = vrot.slane %v1147, %v1151
        %v1158 = vunpack.c.l.b16 %v405
        %v1159 = vunpack.c.l.b16 %v406
        %v1160 = vunpack.c.l.b16 %v407
        %v1161 = vunpack.c.l.b16 %v408
        %v1162 = vpack.c.b16 %v1159, %v1158
        %v1163 = vpack.c.b16 %v1161, %v1160
        %vm1166 = vcmask 261120
        %v1168 = vsel %vm1166, %v1146, 0
        %1170 = vmatprep.subr.bf16.mxu0 0
        %1171 = vmatpush1.bf16.msra.mxu0 %v1162
        %1172 = vmatprep.subr.bf16.mxu0 0
        %1173 = vmatpush1.bf16.msra.mxu0 %v1163
        %1174 = vmatprep.subr.bf16.mxu0 0
        %1175 = vmatpush1.bf16.msra.mxu0 0
        %1176 = vmatprep.subr.bf16.mxu0 0
        %1177 = vmatpush1.bf16.msra.mxu0 0
        %1178 = vmatprep.subr.bf16.mxu0 0
        %1179 = vmatpush1.bf16.msra.mxu0 0
        %1180 = vmatprep.subr.bf16.mxu0 0
        %1181 = vmatpush1.bf16.msra.mxu0 0
        %1182 = vmatprep.subr.bf16.mxu0 0
        %1183 = vmatpush1.bf16.msra.mxu0 0
        %1184 = vmatprep.subr.bf16.mxu0 0
        %1185 = vmatpush1.bf16.msra.mxu0 0
        %1186 = vmatprep.subr.bf16.mxu0 0
        %1187 = vmatpush1.bf16.msra.mxu0 0
        %1188 = vmatprep.subr.bf16.mxu0 0
        %1189 = vmatpush1.bf16.msra.mxu0 0
        %1190 = vmatprep.subr.bf16.mxu0 0
        %1191 = vmatpush1.bf16.msra.mxu0 0
        %1192 = vmatprep.subr.bf16.mxu0 0
        %1193 = vmatpush1.bf16.msra.mxu0 0
        %1194 = vmatprep.subr.bf16.mxu0 0
        %1195 = vmatpush1.bf16.msra.mxu0 0
        %1196 = vmatprep.subr.bf16.mxu0 0
        %1197 = vmatpush1.bf16.msra.mxu0 0
        %1198 = vmatprep.subr.bf16.mxu0 0
        %1199 = vmatpush1.bf16.msra.mxu0 0
        %1200 = vmatprep.subr.bf16.mxu0 0
        %1201 = vmatpush1.bf16.msra.mxu0 0
        %1202 = vmatprep.mubr.bf16.mxu0 0
        %1203 = vmatmul.mubr.bf16.gmra.mrb[0].mxu0 %v1168
        %v1204 = vpop.f32.mrb[0].mxu0
        %v1205 = vadd.f32 %v1152, %v1204
        %v1206 = vpop.f32.mrb[0].mxu0
        %v1207 = vpop.f32.mrb[0].mxu0
        %v1208 = vadd.f32 %v1152, %v1207
        %v1209 = vpop.f32.mrb[0].mxu0
        %1210 = vdwg.mxu0
        %1211 = vst [vmem:[%s326] sm:$0xff] %v1205
        %1212 = vst [vmem:[%s326 + $0x8] sm:$0xff] %v1208
        %s1213 = sand.u32 %s194, 1
        %s1214 = scalar_lea.sflag [#allocation4], %s1213
        %s1215 = sand.u32 %s194, 1
        %s1216 = smul.addr %s1215, 16
        %s1217 = scalar_lea.vmem [#allocation5], %s1216
        // Predicated region
        $region53: #{tpu_custom_call.1} parent=47 // pred_check
          %p1218 = pneg %p204
        $region54: #{tpu_custom_call.1} parent=47 // pred_check_branch
          %1220 = sbr.rel (%p1218) target = $region56
        $region55: #{tpu_custom_call.1} parent=47 // pred_region
          %s1222 = ssub.s32 256, 256
          %1223 = vsyncadd %s1214, %s1222
          %s1224 = smul.addr %s24, 2
          %s1225 = smul.addr %s1224, 128
          %s1226 = scalar_lea.hbm %s7, %s1225
          %s1227 = sshll.u32 %s1217, 4
          %s1228 = int_to_ptr.vmem [resolvable:$true] %s1227
          %1233 = dma.vmem_to_hbm [thread:$0]  %s1228, 256, %s1226, %s1214, 128, 128, 8
        $region56: #{tpu_custom_call.1} parent=47 // pred_fallthru
          _
      $region48: #{tpu_custom_call.1} parent=5 // pred_fallthru
        _
      %p1234 = scmp.le.s32.totalorder 2, %s19
      // Predicated region
      $region57: #{tpu_custom_call.1} parent=5 // pred_check
        %p1235 = pneg %p1234
      $region58: #{tpu_custom_call.1} parent=5 // pred_check_branch
        %1237 = sbr.rel (%p1235) target = $region60
      $region59: #{tpu_custom_call.1} parent=5 // pred_region
        %s1238 = ssub.s32 %s19, 2
        // Predicated region
        $region61: #{tpu_custom_call.1} parent=59 // pred_check
          %p1239 = pneg %p210
        $region62: #{tpu_custom_call.1} parent=59 // pred_check_branch
          %1241 = sbr.rel (%p1239) target = $region64
        $region63: #{tpu_custom_call.1} parent=59 // pred_region
          %s1242 = sand.u32 %s195, 1
          %s1243 = scalar_lea.sflag [#allocation4], %s1242
          %s1244 = sand.u32 %s195, 1
          %s1245 = smul.addr %s1244, 16
          %s1246 = scalar_lea.vmem [#allocation5], %s1245
          %1247 = dma.done %s1243, 256
        $region64: #{tpu_custom_call.1} parent=59 // pred_fallthru
          _
      $region60: #{tpu_custom_call.1} parent=5 // pred_fallthru
        _
    $region6: #{tpu_custom_call.1} parent=1 // loop_footer
      %s23 = sadd.s32 1, %s19
    $region7: #{tpu_custom_call.1} parent=1 // loop_footer_branch
      %18 = sbr.rel target = $region3
    $region8: #{tpu_custom_call.1} parent=1 // loop_exit
      _
    %1248 = vsyncpa [#allocation3], 1
    %s1249 = scalar_lea.sflag [#allocation3], 1
    %1250 = vsyncpa %s1249, 1
    %1251 = vsyncpa [#allocation4], 1
    %s1252 = scalar_lea.sflag [#allocation4], 1
    %1253 = vsyncpa %s1252, 1

</llo_original>
